<compile_context>
chip_gen: v6e
topology: v6e:2x2x1
jax: 0.10.0
libtpu: 0.0.40
codegen_flags: <defaults>
</compile_context>

<pallas_src>
import functools

import jax
import jax.numpy as jnp
from jax.experimental import pallas as pl
from jax.experimental.pallas import tpu as pltpu


_LANE = 128
_SUBLANE = 8
_MAX_TM = 2048                          # keeps (tm, 1) accumulators / spills small
_ANCHOR_ROWS = 256                      # row count used to size the class tile


def _cdiv(a, b):
    return -(-a // b)


@functools.lru_cache(maxsize=None)
def _chip_config():
    """(physical VMEM bytes, #TensorCores the 'parallel' axis shards across)."""
    kind = ""
    try:
        kind = jax.devices()[0].device_kind.lower()
    except Exception:
        pass
    vmem_bytes = None
    try:
        vmem_bytes = int(pltpu.get_tpu_info().vmem_capacity_bytes)
    except Exception:
        vmem_bytes = None
    if vmem_bytes is None:
        vmem_bytes = 64 * 2**20 if "v7" in kind else 128 * 2**20
    multi_tc = ("v7" in kind) or ("v4" in kind) or ("v5p" in kind)
    return vmem_bytes, (2 if multi_tc else 1)


def _choose_tiles(n, c, itemsize, target_block_bytes, num_tc):
    """Pick (row_tile, class_tile): ~target bytes of logits per step."""
    # Class tile: keep the whole class axis when cheap, else tile in 128-lane
    # multiples (the online LSE in the kernel handles the reduction).
    if c <= _LANE or c * itemsize * _SUBLANE <= target_block_bytes:
        tc = c
    else:
        tc = min((c // _LANE) * _LANE,
                 max(_LANE,
                     (target_block_bytes // (_ANCHOR_ROWS * itemsize))
                     // _LANE * _LANE))
    # Row tile: fill the byte budget, multiple of 8 sublanes.
    tm = max(_SUBLANE, min(target_block_bytes // (tc * itemsize), _MAX_TM))
    if tm >= n:
        if num_tc > 1 and n >= num_tc * _SUBLANE:
            # split rows across the TensorCores of multi-TC parts (v7x/megacore)
            tm = _cdiv(_cdiv(n, num_tc), _SUBLANE) * _SUBLANE
        else:
            # single-TC part (v5e/v6e): one big row block, no pointless split
            tm = n
    else:
        tm = max(_SUBLANE, (tm // _SUBLANE) * _SUBLANE)
        if num_tc > 1:
            # keep the row-block count a multiple of the TC count so neither
            # core idles on a tail block
            nb = _cdiv(n, tm)
            if nb % num_tc:
                nb += num_tc - (nb % num_tc)
                tm = max(_SUBLANE, _cdiv(_cdiv(n, nb), _SUBLANE) * _SUBLANE)
    return tm, tc


def _ce_single_kernel(logits_ref, targets_ref, out_ref, *, n, c, tm,
                      needs_row_mask):
    """Fast path: whole class axis resident in one tile (no online LSE)."""
    i = pl.program_id(0)                                        # row block
    x_nat = logits_ref[...]                                     # (tm, c) native dtype
    tgt = targets_ref[...]                                      # (tm, 1) int32
    lane = jax.lax.broadcasted_iota(jnp.int32, (1, c), 1)       # constant lane iota

    m = jnp.max(x_nat, axis=-1, keepdims=True).astype(jnp.float32)
    x = x_nat.astype(jnp.float32)                               # fuses into exp
    s = jnp.sum(jnp.exp(x - m), axis=-1, keepdims=True)
    t = jnp.sum(jnp.where(lane == tgt, x_nat, jnp.zeros((), x_nat.dtype)),
                axis=-1, keepdims=True).astype(jnp.float32)

    loss = m + jnp.log(s) - t                                   # (tm, 1)
    if needs_row_mask:
        row = jax.lax.broadcasted_iota(jnp.int32, (tm, 1), 0) + i * tm
        loss = jnp.where(row < n, loss, 0.0)                    # select-based masking
    blk_sum = jnp.sum(loss, axis=0, keepdims=True)              # (1, 1)
    out_ref[...] = jnp.broadcast_to(blk_sum.reshape(1, 1, 1), (1, 1, 128))


def _ce_online_kernel(logits_ref, targets_ref, out_ref, m_ref, s_ref, t_ref, *,
                      n, c, tm, tc, num_class_blocks,
                      needs_row_mask, needs_class_mask):
    """Class-tiled path: flash-style online log-sum-exp over the class axis."""
    i = pl.program_id(0)   # row-block index ("parallel")
    k = pl.program_id(1)   # class-block index ("arbitrary" reduction axis)

    @pl.when(k == 0)
    def _init():
        m_ref[...] = jnp.full_like(m_ref, -jnp.inf)
        s_ref[...] = jnp.zeros_like(s_ref)
        t_ref[...] = jnp.zeros_like(t_ref)

    x_nat = logits_ref[...]                                     # native dtype tile
    lane = jax.lax.broadcasted_iota(jnp.int32, (1, tc), 1)      # constant lane iota

    if needs_class_mask:
        # Ragged class edge: compare the lane iota against the SCALAR threshold
        # (c - k*tc); interior blocks see an all-true condition.  Applied before
        # the block max so padded lanes can never poison m/s for valid rows.
        valid = lane < (c - k * tc)                             # (1, tc)
        x_nat = jnp.where(valid, x_nat, jnp.asarray(-jnp.inf, x_nat.dtype))

    # block max in the native dtype (2x-rate bf16 VALU on v6e/v7x)
    blk_max = jnp.max(x_nat, axis=-1, keepdims=True).astype(jnp.float32)
    x = x_nat.astype(jnp.float32)                               # fuses into exp below

    # --- online (flash-style) log-sum-exp over the class axis ---
    m_prev = m_ref[...]
    m_new = jnp.maximum(m_prev, blk_max)
    alpha = jnp.exp(m_prev - m_new)
    s_ref[...] = alpha * s_ref[...] + jnp.sum(jnp.exp(x - m_new),
                                              axis=-1, keepdims=True)
    m_ref[...] = m_new

    # --- target logit: lane iota vs scalar-shifted target, native-dtype select ---
    tgt_local = targets_ref[...] - k * tc                       # (tm, 1) int32
    t_blk = jnp.sum(jnp.where(lane == tgt_local, x_nat,
                              jnp.zeros((), x_nat.dtype)),
                    axis=-1, keepdims=True)
    t_ref[...] = t_ref[...] + t_blk.astype(jnp.float32)

    @pl.when(k == num_class_blocks - 1)
    def _finalize():
        loss = m_ref[...] + jnp.log(s_ref[...]) - t_ref[...]    # (tm, 1)
        if needs_row_mask:
            row = jax.lax.broadcasted_iota(jnp.int32, (tm, 1), 0) + i * tm
            loss = jnp.where(row < n, loss, 0.0)                # select-based masking
        blk_sum = jnp.sum(loss, axis=0, keepdims=True)          # (1, 1)
        out_ref[...] = jnp.broadcast_to(blk_sum.reshape(1, 1, 1), (1, 1, 128))


def cross_entropy_loss(logits, targets, *, tm=None, tc=None):
    """Equivalent of nn.CrossEntropyLoss()(logits, targets) (mean reduction).

    logits:  (N, C) float array (f32 or bf16 — streamed in its native dtype).
    targets: (N,)   int array of class indices in [0, C).
    """
    n, c = logits.shape
    itemsize = jnp.dtype(logits.dtype).itemsize

    vmem_bytes, num_tc = _chip_config()
    small_vmem = vmem_bytes <= 64 * 2**20                       # v7x-class part
    target_block_bytes = (4 if small_vmem else 6) * 2**20

    auto_tm, auto_tc = _choose_tiles(n, c, itemsize, target_block_bytes, num_tc)
    tm = auto_tm if tm is None else tm
    tc = auto_tc if tc is None else min(tc, c)

    num_row_blocks = _cdiv(n, tm)
    num_class_blocks = _cdiv(c, tc)
    needs_row_mask = (n % tm != 0)
    needs_class_mask = (c % tc != 0)
    targets2d = targets.astype(jnp.int32).reshape(n, 1)

    # double-buffered native-dtype input + f32 upcast/exp intermediates + slack
    block_bytes = tm * tc * itemsize
    f32_block = tm * tc * 4
    cap = (40 if small_vmem else 100) * 2**20
    vmem_limit = int(max(16 * 2**20,
                         min(cap, 2 * block_bytes + 2 * f32_block + 8 * 2**20)))

    out_shape = jax.ShapeDtypeStruct((num_row_blocks, 1, 128), jnp.float32)

    if num_class_blocks == 1:
        kernel = functools.partial(
            _ce_single_kernel, n=n, c=c, tm=tm, needs_row_mask=needs_row_mask)
        partial_sums = pl.pallas_call(
            kernel,
            out_shape=out_shape,
            grid_spec=pltpu.PrefetchScalarGridSpec(
                num_scalar_prefetch=0,
                grid=(num_row_blocks,),
                in_specs=[
                    pl.BlockSpec((tm, c), lambda i: (i, 0)),    # logits tile
                    pl.BlockSpec((tm, 1), lambda i: (i, 0)),    # targets tile
                ],
                out_specs=pl.BlockSpec((1, 1, 128), lambda i: (i, 0, 0)),
            ),
            compiler_params=pltpu.CompilerParams(
                dimension_semantics=("parallel",),
                vmem_limit_bytes=vmem_limit),
        )(logits, targets2d)
    else:
        kernel = functools.partial(
            _ce_online_kernel, n=n, c=c, tm=tm, tc=tc,
            num_class_blocks=num_class_blocks,
            needs_row_mask=needs_row_mask,
            needs_class_mask=needs_class_mask)
        partial_sums = pl.pallas_call(
            kernel,
            out_shape=out_shape,
            grid_spec=pltpu.PrefetchScalarGridSpec(
                num_scalar_prefetch=0,
                grid=(num_row_blocks, num_class_blocks),
                in_specs=[
                    pl.BlockSpec((tm, tc), lambda i, k: (i, k)),   # logits tile
                    pl.BlockSpec((tm, 1), lambda i, k: (i, 0)),    # targets tile
                ],
                out_specs=pl.BlockSpec((1, 1, 128), lambda i, k: (i, 0, 0)),
                scratch_shapes=[
                    pltpu.VMEM((tm, 1), jnp.float32),   # running max
                    pltpu.VMEM((tm, 1), jnp.float32),   # running sum-exp
                    pltpu.VMEM((tm, 1), jnp.float32),   # running target logit
                ],
            ),
            compiler_params=pltpu.CompilerParams(
                dimension_semantics=("parallel", "arbitrary"),
                vmem_limit_bytes=vmem_limit),
        )(logits, targets2d)

    # default PyTorch reduction='mean'
    return jnp.sum(partial_sums[:, 0, 0]) / n


if __name__ == "__main__":
    key = jax.random.PRNGKey(0)
    k1, k2 = jax.random.split(key)

    def ref_loss(lg, tg):
        lg32 = lg.astype(jnp.float32)
        return jnp.mean(
            jax.nn.logsumexp(lg32, axis=-1)
            - jnp.take_along_axis(lg32, tg[:, None], axis=-1)[:, 0])

    # 1) small f32 case (single class block -> fast path, whole class axis resident)
    N, C = 8, 32
    logits = jax.random.normal(k1, (N, C), dtype=jnp.float32)
    targets = jax.random.randint(k2, (N,), 0, C, dtype=jnp.int32)
    loss = cross_entropy_loss(logits, targets)
    jax.block_until_ready(loss)
    assert jnp.allclose(loss, ref_loss(logits, targets), rtol=1e-5, atol=1e-5), \
        (loss, ref_loss(logits, targets))

    # 2) bf16 pass-through (no wrapper upcast; kernel upcasts on-chip)
    logits_bf16 = logits.astype(jnp.bfloat16)
    loss_bf16 = cross_entropy_loss(logits_bf16, targets)
    jax.block_until_ready(loss_bf16)
    assert jnp.allclose(loss_bf16, ref_loss(logits_bf16, targets),
                        rtol=1e-4, atol=1e-4), (loss_bf16, ref_loss(logits_bf16, targets))

    # 3) class-tiled online-LSE path with ragged row AND class tiles
    N2, C2 = 24, 320
    k3, k4 = jax.random.split(k2)
    logits2 = jax.random.normal(k3, (N2, C2), dtype=jnp.float32)
    targets2 = jax.random.randint(k4, (N2,), 0, C2, dtype=jnp.int32)
    loss2 = cross_entropy_loss(logits2, targets2, tm=16, tc=128)
    jax.block_until_ready(loss2)
    assert jnp.allclose(loss2, ref_loss(logits2, targets2), rtol=1e-5, atol=1e-5), \
        (loss2, ref_loss(logits2, targets2))

    print("KERNEL_OK")
</pallas_src>

<mosaic_0001>
module attributes {stable_mosaic.version = 11 : i64} {
  func.func @_ce_single_kernel(%arg0: i32, %arg1: memref<8x32xf32, #tpu.memory_space<vmem>>, %arg2: memref<8x1xi32, #tpu.memory_space<vmem>>, %arg3: memref<1x1x128xf32, #tpu.memory_space<vmem>>) attributes {dimension_semantics = [#tpu.dimension_semantics<parallel>], iteration_bounds = array<i64: 1>, scalar_prefetch = 0 : i64, scratch_operands = 0 : i64, tpu.core_type = #tpu.core_type<tc>, window_params = [{transform_indices = @transform_0, window_bounds = array<i64: 8, 32>}, {transform_indices = @transform_1, window_bounds = array<i64: 8, 1>}, {transform_indices = @transform_2, window_bounds = array<i64: 1, 1, 128>}]} {
    %c0 = arith.constant 0 : index
    %c0_0 = arith.constant 0 : index
    %0 = vector.load %arg1[%c0, %c0_0] : memref<8x32xf32, #tpu.memory_space<vmem>>, vector<8x32xf32>
    %c0_1 = arith.constant 0 : index
    %c0_2 = arith.constant 0 : index
    %1 = vector.load %arg2[%c0_1, %c0_2] : memref<8x1xi32, #tpu.memory_space<vmem>>, vector<8x1xi32>
    %2 = tpu.iota {dimensions = array<i32: 1>} : vector<1x32xi32>
    %cst = arith.constant dense<0xFF800000> : vector<8xf32>
    %3 = vector.multi_reduction <maximumf>, %0, %cst [1] : vector<8x32xf32> to vector<8xf32>
    %4 = vector.shape_cast %3 : vector<8xf32> to vector<8x1xf32>
    %5 = vector.broadcast %4 : vector<8x1xf32> to vector<8x32xf32>
    %6 = arith.subf %0, %5 : vector<8x32xf32>
    %7 = math.exp %6 : vector<8x32xf32>
    %cst_3 = arith.constant dense<0.000000e+00> : vector<8xf32>
    %8 = vector.multi_reduction <add>, %7, %cst_3 [1] : vector<8x32xf32> to vector<8xf32>
    %9 = vector.shape_cast %8 : vector<8xf32> to vector<8x1xf32>
    %10 = vector.broadcast %2 : vector<1x32xi32> to vector<8x32xi32>
    %11 = vector.broadcast %1 : vector<8x1xi32> to vector<8x32xi32>
    %12 = arith.cmpi eq, %10, %11 : vector<8x32xi32>
    %cst_4 = arith.constant 0.000000e+00 : f32
    %13 = vector.broadcast %cst_4 : f32 to vector<8x32xf32>
    %14 = arith.select %12, %0, %13 : vector<8x32xi1>, vector<8x32xf32>
    %cst_5 = arith.constant dense<0.000000e+00> : vector<8xf32>
    %15 = vector.multi_reduction <add>, %14, %cst_5 [1] : vector<8x32xf32> to vector<8xf32>
    %16 = vector.shape_cast %15 : vector<8xf32> to vector<8x1xf32>
    %17 = math.log %9 : vector<8x1xf32>
    %18 = arith.addf %4, %17 : vector<8x1xf32>
    %19 = arith.subf %18, %16 : vector<8x1xf32>
    %cst_6 = arith.constant dense<0.000000e+00> : vector<1xf32>
    %20 = vector.multi_reduction <add>, %19, %cst_6 [0] : vector<8x1xf32> to vector<1xf32>
    %21 = vector.shape_cast %20 : vector<1xf32> to vector<1x1xf32>
    %22 = vector.shape_cast %21 : vector<1x1xf32> to vector<1x1x1xf32>
    %23 = vector.shape_cast %22 : vector<1x1x1xf32> to vector<1x1x1xf32>
    %24 = vector.broadcast %23 : vector<1x1x1xf32> to vector<1x1x128xf32>
    %c0_7 = arith.constant 0 : index
    %c0_8 = arith.constant 0 : index
    %c0_9 = arith.constant 0 : index
    %25 = vector.load %arg3[%c0_7, %c0_8, %c0_9] : memref<1x1x128xf32, #tpu.memory_space<vmem>>, vector<1x1x128xf32>
    tpu.vector_store %arg3[%c0_7, %c0_8, %c0_9], %24 {strides = array<i32>} : memref<1x1x128xf32, #tpu.memory_space<vmem>>, vector<1x1x128xf32>,
    return
  }
  func.func @transform_0(%arg0: i32) -> (i32, i32) {
    %c0_i32 = arith.constant 0 : i32
    %c0_i32_0 = arith.constant 0 : i32
    return %arg0, %c0_i32 : i32, i32
  }
  func.func @transform_1(%arg0: i32) -> (i32, i32) {
    %c0_i32 = arith.constant 0 : i32
    %c0_i32_0 = arith.constant 0 : i32
    return %arg0, %c0_i32 : i32, i32
  }
  func.func @transform_2(%arg0: i32) -> (i32, i32, i32) {
    %c0_i32 = arith.constant 0 : i32
    %c0_i32_0 = arith.constant 0 : i32
    %c0_i32_1 = arith.constant 0 : i32
    return %arg0, %c0_i32, %c0_i32_0 : i32, i32, i32
  }
}

</mosaic_0001>

<llo_original>
// kernel: tpu_custom_call.1
$region0: #{tpu_custom_call.1}
  #allocation0 [shape = 'u32[]', space=smem, size = 0x4, offset = 0x4, fixed_abs, tag = 'smem constant byte address 0x4 - core index']
  #allocation1 [shape = 'u32[144,128]{1,0:T(1,128)}', space=vmem, size = 0x12000, scoped, tag = 'internal scratch']
  %s0 = inlined_call_operand.vmem [shape: f32[8,32], index: 0, kind: input, shape index: {}]
  %s1 = inlined_call_operand.vmem [shape: s32[8,1], index: 1, kind: input, shape index: {}]
  %s2 = inlined_call_operand.hbm [shape: f32[1,1,128], index: 2, kind: output, shape index: {}]
  %s3 = sld [smem:[#allocation0]]
  $region18: #{tpu_custom_call.1} parent=0
    _
  %s5 = ssub.s32 1, %s3
  %s6 = scalar_select 0, %s5, %s3
  $region1: #{tpu_custom_call.1} parent=0
    #allocation2 [shape = 'u8[512]{0}', space=vmem, size = 0x400, scoped, tag = 'output window, operand 0, single buffered']
    #allocation3 [shape = 's32[1]{0}', space=sflag, size = 0x4, scoped, tag = 'scoped memory for tpu_custom_call.1']
    %7 = vsyncpa [#allocation3], 0
    // Predicated region
    $region2: #{tpu_custom_call.1} parent=1 // pred_check
      _
    $region3: #{tpu_custom_call.1} parent=1 // pred_check_branch
      %9 = sbr.rel (0) target = $region5
    $region4: #{tpu_custom_call.1} parent=1 // pred_region
      _
    $region5: #{tpu_custom_call.1} parent=1 // pred_fallthru
      _
    // Predicated region
    $region6: #{tpu_custom_call.1} parent=1 // pred_check
      _
    $region7: #{tpu_custom_call.1} parent=1 // pred_check_branch
      %11 = sbr.rel (0) target = $region9
    $region8: #{tpu_custom_call.1} parent=1 // pred_region
      _
    $region9: #{tpu_custom_call.1} parent=1 // pred_fallthru
      _
    %v12 = vld [vmem:[%s0] sm:$0xff]
    %v13 = vld [vmem:[%s1] sm:$0xff]
    %v14 = vlaneseq
    %v15 = vand.u32 %v14, 127
    %vm16 = vcmask 261120
    %v17 = vsel %vm16, %v12, -inf
    %18 = vmax.xlane.f32.xlu0 %v17
    %v19 = vpop.xlane.xlu0 %18
    %v20 = vsub.f32 %v12, %v19
    %v21 = vmul.f32 %v20, 1.442695
    %v22 = vpow.pop %v21
    %v23 = vsel %vm16, %v22, 0.0
    %24 = vadd.xlane.f32.xlu0 %v23
    %v25 = vpop.xlane.xlu0 %24
    %26 = vset.pattern.permute.xlu0 0
    %27 = vperm.xlu0 %26, %v13
    %v28 = vpop.permute.xlu0 %27
    %vm29 = vcmp.eq.s32.totalorder %v15, %v28
    %v30 = vsel %vm29, %v12, 0.0
    %v31 = vsel %vm16, %v30, 0.0
    %32 = vadd.xlane.f32.xlu0 %v31
    %v33 = vpop.xlane.xlu0 %32
    %v34 = vlog2.pop %v25
    %v35 = vmul.f32 %v34, 0.6931472
    %v36 = vadd.f32 %v19, %v35
    %v37 = vsub.f32 %v36, %v33
    %v38 = vrot.slane %v37, 4
    %v39 = vadd.f32 %v37, %v38
    %v40 = vrot.slane %v39, 2
    %v41 = vadd.f32 %v39, %v40
    %v42 = vrot.slane %v41, 1
    %v43 = vadd.f32 %v41, %v42
    %44 = vst [vmem:[#allocation2] sm:$0x1] %v43
    // Predicated region
    $region10: #{tpu_custom_call.1} parent=1 // pred_check
      _
    $region11: #{tpu_custom_call.1} parent=1 // pred_check_branch
      %46 = sbr.rel (0) target = $region13
    $region12: #{tpu_custom_call.1} parent=1 // pred_region
      %s48 = ssub.s32 16, 16
      %49 = vsyncadd [#allocation3], %s48
      %s51 = sshll.u32 [#allocation2], 4
      %s52 = int_to_ptr.vmem [resolvable:$true] %s51
      %54 = dma.vmem_to_hbm [thread:$0]  %s52, 16, %s2, [#allocation3]
    $region13: #{tpu_custom_call.1} parent=1 // pred_fallthru
      _
    // Predicated region
    $region14: #{tpu_custom_call.1} parent=1 // pred_check
      _
    $region15: #{tpu_custom_call.1} parent=1 // pred_check_branch
      %56 = sbr.rel (0) target = $region17
    $region16: #{tpu_custom_call.1} parent=1 // pred_region
      %57 = dma.done [#allocation3], 16
    $region17: #{tpu_custom_call.1} parent=1 // pred_fallthru
      _
    %58 = vsyncpa [#allocation3], 1

</llo_original>
